<compile_context>
chip_gen: v7x
topology: tpu7x:2x2x1
jax: 0.10.0
libtpu: 0.0.40
codegen_flags: <defaults>
</compile_context>

<pallas_src>
import jax
import jax.numpy as jnp
from jax import lax
from jax.experimental import pallas as pl
from jax.experimental.pallas import tpu as pltpu


def _attention_kernel(x_ref, w_ref, b_ref, out_ref, scores_ref, probs_ref):
    # x_ref: (Bb, S, E); w_ref: (3, E, E) in PyTorch (out, in) layout; b_ref: (3, 1, E)
    Bb, S, E = x_ref.shape

    # Layout-free when S % 8 == 0 (true at the tested shapes).
    x2d = x_ref[...].reshape(Bb * S, E)

    def proj(i):
        # x @ W_i^T + b_i without materializing any transpose: contract the
        # "in" (E) dims of both operands.  Clean per-E weight tiles mean no
        # lane-offset slicing of a fused (.., 3E) result.
        return lax.dot_general(
            x2d, w_ref[i],
            dimension_numbers=(((1,), (1,)), ((), ())),
            preferred_element_type=jnp.float32,
        ) + b_ref[i]

    q = proj(0).reshape(Bb, S, E)
    k = proj(1).reshape(Bb, S, E)
    v = proj(2).reshape(Bb, S, E)

    scale = 1.0 / jnp.sqrt(jnp.float32(E))
    # Batched Q @ K^T without materializing K^T: contract the E dims directly.
    scores = lax.dot_general(
        q, k,
        dimension_numbers=(((2,), (2,)), ((0,), (0,))),
        preferred_element_type=jnp.float32,
    ) * scale                                            # (Bb, S, S)

    # Numerically stable softmax along the last axis (== nn.Softmax(dim=-1)).
    # Exact divide: the approx vrcp reciprocal broke the 1e-4 accuracy check.
    m = jnp.max(scores, axis=-1, keepdims=True)
    e = jnp.exp(scores - m)
    probs = e / jnp.sum(e, axis=-1, keepdims=True)

    out = lax.dot_general(
        probs, v,
        dimension_numbers=(((2,), (1,)), ((0,), (0,))),
        preferred_element_type=jnp.float32,
    )                                                    # (Bb, S, E)

    # Lane-dense writeback: flatten the trailing dims so every store is a wide,
    # unmasked vst instead of an 8/32-lane masked partial store.
    out_ref[...] = out.reshape(Bb, 1, S * E).astype(out_ref.dtype)
    scores_ref[...] = scores.reshape(Bb, 1, S * S).astype(scores_ref.dtype)
    probs_ref[...] = probs.reshape(Bb, 1, S * S).astype(probs_ref.dtype)


def _per_step_vmem_bytes(bb, S, E):
    f32 = 4
    x_in = 2 * bb * S * E * f32                      # double-buffered input block
    weights = 3 * E * E * f32 + 3 * E * f32          # (single-buffered when large)
    outs = 2 * (bb * S * E + 2 * bb * S * S) * f32   # double-buffered outputs
    live = bb * S * (3 * E + 3 * S) * f32            # q/k/v + scores/e/probs
    return x_in + weights + outs + live


def _pick_batch_block(B, S, E, *, target_rows=512, vmem_budget=20 << 20):
    """Largest divisor of B that (a) leaves >= 2 grid steps so both v7x
    TensorCores get work and DMA/compute overlap across steps, (b) keeps
    roughly target_rows (Bb*S) rows per step to fill the MXU M dim, and
    (c) fits an explicit VMEM budget (sized for v7x's 64 MiB, not 128 MiB)."""
    best = 1
    for d in range(1, B + 1):
        if B % d:
            continue
        if B >= 2 and B // d < 2:
            continue
        if d != 1 and d * S > target_rows:
            continue
        if d != 1 and _per_step_vmem_bytes(d, S, E) > vmem_budget:
            continue
        best = d
    return best


def attention_mechanism(x, wq, wk, wv, bq, bk, bv, *, batch_block=None):
    """x: (B, S, E). Weights in PyTorch Linear layout (out, in); biases (E,)."""
    B, S, E = x.shape

    # Stack (not concat) so each projection keeps its own clean (E, E) tile.
    w_qkv = jnp.stack([wq, wk, wv], axis=0)                    # (3, E, E)
    b_qkv = jnp.stack([bq, bk, bv], axis=0).reshape(3, 1, E)   # (3, 1, E)

    if batch_block is None:
        batch_block = _pick_batch_block(B, S, E)
    assert B % batch_block == 0
    grid = (B // batch_block,)

    # Constant-index params never need a prefetched "next" block; single-buffer
    # them when they're big enough for the VMEM saving to matter.
    param_kwargs = {}
    if 3 * E * E * 4 >= (1 << 20):
        param_kwargs["pipeline_mode"] = pl.Buffered(1)

    # Lane-dense output slabs; reshaped back (free, row-major) in the wrapper.
    out_shapes = (
        jax.ShapeDtypeStruct((B, 1, S * E), jnp.float32),   # weighted_sum
        jax.ShapeDtypeStruct((B, 1, S * S), jnp.float32),   # attention_scores
        jax.ShapeDtypeStruct((B, 1, S * S), jnp.float32),   # attention_probs
    )
    # TODO(synk): bf16 scores/probs would halve the dominant HBM writeback, but
    # the module contract returns f32 for all three outputs.
    # TODO(synk): for large S, add a query-dim grid axis (flash-style tq blocks)
    # so per-step VMEM doesn't scale as S^2 against v7x's 64 MiB VMEM.

    out_flat, scores_flat, probs_flat = pl.pallas_call(
        _attention_kernel,
        out_shape=out_shapes,
        grid_spec=pltpu.PrefetchScalarGridSpec(
            num_scalar_prefetch=0,
            grid=grid,
            in_specs=[
                pl.BlockSpec((batch_block, S, E), lambda b: (b, 0, 0)),
                pl.BlockSpec((3, E, E), lambda b: (0, 0, 0), **param_kwargs),
                pl.BlockSpec((3, 1, E), lambda b: (0, 0, 0), **param_kwargs),
            ],
            out_specs=[
                pl.BlockSpec((batch_block, 1, S * E), lambda b: (b, 0, 0)),
                pl.BlockSpec((batch_block, 1, S * S), lambda b: (b, 0, 0)),
                pl.BlockSpec((batch_block, 1, S * S), lambda b: (b, 0, 0)),
            ],
        ),
        compiler_params=pltpu.CompilerParams(
            dimension_semantics=("parallel",),
            vmem_limit_bytes=32 * 1024 * 1024,   # explicit, sized for v7x (64 MiB phys)
        ),
    )(x, w_qkv, b_qkv)

    return (
        out_flat.reshape(B, S, E),
        scores_flat.reshape(B, S, S),
        probs_flat.reshape(B, S, S),
    )


def _reference(x, wq, wk, wv, bq, bk, bv):
    q = x @ wq.T + bq
    k = x @ wk.T + bk
    v = x @ wv.T + bv
    scores = (q @ jnp.swapaxes(k, -2, -1)) / jnp.sqrt(jnp.float32(x.shape[-1]))
    probs = jax.nn.softmax(scores, axis=-1)
    return probs @ v, scores, probs


if __name__ == "__main__":
    B, S, E = 2, 8, 32
    key = jax.random.PRNGKey(0)
    kx, kwq, kwk, kwv, kbq, kbk, kbv = jax.random.split(key, 7)

    x = jax.random.normal(kx, (B, S, E), dtype=jnp.float32)
    # Deterministic init mimicking nn.Linear's uniform(-1/sqrt(E), 1/sqrt(E))
    bound = 1.0 / jnp.sqrt(jnp.float32(E))
    wq = jax.random.uniform(kwq, (E, E), minval=-bound, maxval=bound, dtype=jnp.float32)
    wk = jax.random.uniform(kwk, (E, E), minval=-bound, maxval=bound, dtype=jnp.float32)
    wv = jax.random.uniform(kwv, (E, E), minval=-bound, maxval=bound, dtype=jnp.float32)
    bq = jax.random.uniform(kbq, (E,), minval=-bound, maxval=bound, dtype=jnp.float32)
    bk = jax.random.uniform(kbk, (E,), minval=-bound, maxval=bound, dtype=jnp.float32)
    bv = jax.random.uniform(kbv, (E,), minval=-bound, maxval=bound, dtype=jnp.float32)

    out, scores, probs = attention_mechanism(x, wq, wk, wv, bq, bk, bv)
    jax.block_until_ready((out, scores, probs))

    ref_out, ref_scores, ref_probs = _reference(x, wq, wk, wv, bq, bk, bv)
    assert jnp.allclose(out, ref_out, atol=1e-4, rtol=1e-4)
    assert jnp.allclose(scores, ref_scores, atol=1e-4, rtol=1e-4)
    assert jnp.allclose(probs, ref_probs, atol=1e-4, rtol=1e-4)

    print("KERNEL_OK")
</pallas_src>

<mosaic_0001>
module attributes {stable_mosaic.version = 11 : i64} {
  func.func @_attention_kernel(%arg0: i32, %arg1: memref<1x8x32xf32, #tpu.memory_space<vmem>>, %arg2: memref<3x32x32xf32, #tpu.memory_space<vmem>>, %arg3: memref<3x1x32xf32, #tpu.memory_space<vmem>>, %arg4: memref<1x1x256xf32, #tpu.memory_space<vmem>>, %arg5: memref<1x1x64xf32, #tpu.memory_space<vmem>>, %arg6: memref<1x1x64xf32, #tpu.memory_space<vmem>>) attributes {dimension_semantics = [#tpu.dimension_semantics<parallel>], iteration_bounds = array<i64: 2>, scalar_prefetch = 0 : i64, scratch_operands = 0 : i64, tpu.core_type = #tpu.core_type<tc>, window_params = [{transform_indices = @transform_0, window_bounds = array<i64: 1, 8, 32>}, {pipeline_mode = #tpu.pipeline_mode<synchronous>, transform_indices = @transform_1, window_bounds = array<i64: 3, 32, 32>}, {pipeline_mode = #tpu.pipeline_mode<synchronous>, transform_indices = @transform_2, window_bounds = array<i64: 3, 1, 32>}, {transform_indices = @transform_3, window_bounds = array<i64: 1, 1, 256>}, {transform_indices = @transform_4, window_bounds = array<i64: 1, 1, 64>}, {transform_indices = @transform_5, window_bounds = array<i64: 1, 1, 64>}]} {
    %c0 = arith.constant 0 : index
    %c0_0 = arith.constant 0 : index
    %c0_1 = arith.constant 0 : index
    %0 = vector.load %arg1[%c0, %c0_0, %c0_1] : memref<1x8x32xf32, #tpu.memory_space<vmem>>, vector<1x8x32xf32>
    %1 = vector.shape_cast %0 : vector<1x8x32xf32> to vector<8x32xf32>
    %c0_2 = arith.constant 0 : index
    %c0_3 = arith.constant 0 : index
    %c0_4 = arith.constant 0 : index
    %2 = vector.load %arg2[%c0_2, %c0_3, %c0_4] : memref<3x32x32xf32, #tpu.memory_space<vmem>>, vector<1x32x32xf32>
    %3 = vector.shape_cast %2 : vector<1x32x32xf32> to vector<32x32xf32>
    %cst = arith.constant dense<0.000000e+00> : vector<8x32xf32>
    %4 = tpu.matmul %1, %3, %cst {dimension_numbers = #tpu.dot_dimension_numbers<[1], [1], [0], [0], [0, 0, 1, 0], [], []>} : vector<8x32xf32>, vector<32x32xf32>, vector<8x32xf32> -> vector<8x32xf32>
    %c0_5 = arith.constant 0 : index
    %c0_6 = arith.constant 0 : index
    %c0_7 = arith.constant 0 : index
    %5 = vector.load %arg3[%c0_5, %c0_6, %c0_7] : memref<3x1x32xf32, #tpu.memory_space<vmem>>, vector<1x1x32xf32>
    %6 = vector.shape_cast %5 : vector<1x1x32xf32> to vector<1x32xf32>
    %7 = vector.broadcast %6 : vector<1x32xf32> to vector<8x32xf32>
    %8 = arith.addf %4, %7 : vector<8x32xf32>
    %9 = vector.shape_cast %8 : vector<8x32xf32> to vector<1x8x32xf32>
    %c1 = arith.constant 1 : index
    %c0_8 = arith.constant 0 : index
    %c0_9 = arith.constant 0 : index
    %10 = vector.load %arg2[%c1, %c0_8, %c0_9] : memref<3x32x32xf32, #tpu.memory_space<vmem>>, vector<1x32x32xf32>
    %11 = vector.shape_cast %10 : vector<1x32x32xf32> to vector<32x32xf32>
    %cst_10 = arith.constant dense<0.000000e+00> : vector<8x32xf32>
    %12 = tpu.matmul %1, %11, %cst_10 {dimension_numbers = #tpu.dot_dimension_numbers<[1], [1], [0], [0], [0, 0, 1, 0], [], []>} : vector<8x32xf32>, vector<32x32xf32>, vector<8x32xf32> -> vector<8x32xf32>
    %c1_11 = arith.constant 1 : index
    %c0_12 = arith.constant 0 : index
    %c0_13 = arith.constant 0 : index
    %13 = vector.load %arg3[%c1_11, %c0_12, %c0_13] : memref<3x1x32xf32, #tpu.memory_space<vmem>>, vector<1x1x32xf32>
    %14 = vector.shape_cast %13 : vector<1x1x32xf32> to vector<1x32xf32>
    %15 = vector.broadcast %14 : vector<1x32xf32> to vector<8x32xf32>
    %16 = arith.addf %12, %15 : vector<8x32xf32>
    %17 = vector.shape_cast %16 : vector<8x32xf32> to vector<1x8x32xf32>
    %c2 = arith.constant 2 : index
    %c0_14 = arith.constant 0 : index
    %c0_15 = arith.constant 0 : index
    %18 = vector.load %arg2[%c2, %c0_14, %c0_15] : memref<3x32x32xf32, #tpu.memory_space<vmem>>, vector<1x32x32xf32>
    %19 = vector.shape_cast %18 : vector<1x32x32xf32> to vector<32x32xf32>
    %cst_16 = arith.constant dense<0.000000e+00> : vector<8x32xf32>
    %20 = tpu.matmul %1, %19, %cst_16 {dimension_numbers = #tpu.dot_dimension_numbers<[1], [1], [0], [0], [0, 0, 1, 0], [], []>} : vector<8x32xf32>, vector<32x32xf32>, vector<8x32xf32> -> vector<8x32xf32>
    %c2_17 = arith.constant 2 : index
    %c0_18 = arith.constant 0 : index
    %c0_19 = arith.constant 0 : index
    %21 = vector.load %arg3[%c2_17, %c0_18, %c0_19] : memref<3x1x32xf32, #tpu.memory_space<vmem>>, vector<1x1x32xf32>
    %22 = vector.shape_cast %21 : vector<1x1x32xf32> to vector<1x32xf32>
    %23 = vector.broadcast %22 : vector<1x32xf32> to vector<8x32xf32>
    %24 = arith.addf %20, %23 : vector<8x32xf32>
    %25 = vector.shape_cast %24 : vector<8x32xf32> to vector<1x8x32xf32>
    %cst_20 = arith.constant 3.200000e+01 : f32
    %26 = math.sqrt %cst_20 : f32
    %cst_21 = arith.constant 1.000000e+00 : f32
    %27 = arith.divf %cst_21, %26 : f32
    %cst_22 = arith.constant dense<0.000000e+00> : vector<1x8x8xf32>
    %28 = tpu.matmul %9, %17, %cst_22 {dimension_numbers = #tpu.dot_dimension_numbers<[2], [2], [1], [1], [0, 0, 0, 1, 1, 1], [0], [0]>} : vector<1x8x32xf32>, vector<1x8x32xf32>, vector<1x8x8xf32> -> vector<1x8x8xf32>
    %29 = vector.broadcast %27 : f32 to vector<1x8x8xf32>
    %30 = arith.mulf %28, %29 : vector<1x8x8xf32>
    %cst_23 = arith.constant dense<0xFF800000> : vector<1x8xf32>
    %31 = vector.multi_reduction <maximumf>, %30, %cst_23 [2] : vector<1x8x8xf32> to vector<1x8xf32>
    %32 = vector.shape_cast %31 : vector<1x8xf32> to vector<1x8x1xf32>
    %33 = vector.broadcast %32 : vector<1x8x1xf32> to vector<1x8x8xf32>
    %34 = arith.subf %30, %33 : vector<1x8x8xf32>
    %35 = math.exp %34 : vector<1x8x8xf32>
    %cst_24 = arith.constant dense<0.000000e+00> : vector<1x8xf32>
    %36 = vector.multi_reduction <add>, %35, %cst_24 [2] : vector<1x8x8xf32> to vector<1x8xf32>
    %37 = vector.shape_cast %36 : vector<1x8xf32> to vector<1x8x1xf32>
    %38 = vector.broadcast %37 : vector<1x8x1xf32> to vector<1x8x8xf32>
    %39 = arith.divf %35, %38 : vector<1x8x8xf32>
    %cst_25 = arith.constant dense<0.000000e+00> : vector<1x8x32xf32>
    %40 = tpu.matmul %39, %25, %cst_25 {dimension_numbers = #tpu.dot_dimension_numbers<[2], [1], [1], [2], [0, 0, 0, 1, 1, 2], [0], [0]>} : vector<1x8x8xf32>, vector<1x8x32xf32>, vector<1x8x32xf32> -> vector<1x8x32xf32>
    %41 = vector.shape_cast %40 : vector<1x8x32xf32> to vector<1x1x256xf32>
    %c0_26 = arith.constant 0 : index
    %c0_27 = arith.constant 0 : index
    %c0_28 = arith.constant 0 : index
    %42 = vector.load %arg4[%c0_26, %c0_27, %c0_28] : memref<1x1x256xf32, #tpu.memory_space<vmem>>, vector<1x1x256xf32>
    tpu.vector_store %arg4[%c0_26, %c0_27, %c0_28], %41 {strides = array<i32>} : memref<1x1x256xf32, #tpu.memory_space<vmem>>, vector<1x1x256xf32>,
    %43 = vector.shape_cast %30 : vector<1x8x8xf32> to vector<1x1x64xf32>
    %c0_29 = arith.constant 0 : index
    %c0_30 = arith.constant 0 : index
    %c0_31 = arith.constant 0 : index
    %44 = vector.load %arg5[%c0_29, %c0_30, %c0_31] : memref<1x1x64xf32, #tpu.memory_space<vmem>>, vector<1x1x64xf32>
    tpu.vector_store %arg5[%c0_29, %c0_30, %c0_31], %43 {strides = array<i32>} : memref<1x1x64xf32, #tpu.memory_space<vmem>>, vector<1x1x64xf32>,
    %45 = vector.shape_cast %39 : vector<1x8x8xf32> to vector<1x1x64xf32>
    %c0_32 = arith.constant 0 : index
    %c0_33 = arith.constant 0 : index
    %c0_34 = arith.constant 0 : index
    %46 = vector.load %arg6[%c0_32, %c0_33, %c0_34] : memref<1x1x64xf32, #tpu.memory_space<vmem>>, vector<1x1x64xf32>
    tpu.vector_store %arg6[%c0_32, %c0_33, %c0_34], %45 {strides = array<i32>} : memref<1x1x64xf32, #tpu.memory_space<vmem>>, vector<1x1x64xf32>,
    return
  }
  func.func @transform_0(%arg0: i32) -> (i32, i32, i32) {
    %c0_i32 = arith.constant 0 : i32
    %c0_i32_0 = arith.constant 0 : i32
    %c0_i32_1 = arith.constant 0 : i32
    return %arg0, %c0_i32, %c0_i32_0 : i32, i32, i32
  }
  func.func @transform_1(%arg0: i32) -> (i32, i32, i32) {
    %c0_i32 = arith.constant 0 : i32
    %c0_i32_0 = arith.constant 0 : i32
    %c0_i32_1 = arith.constant 0 : i32
    %c0_i32_2 = arith.constant 0 : i32
    return %c0_i32, %c0_i32_0, %c0_i32_1 : i32, i32, i32
  }
  func.func @transform_2(%arg0: i32) -> (i32, i32, i32) {
    %c0_i32 = arith.constant 0 : i32
    %c0_i32_0 = arith.constant 0 : i32
    %c0_i32_1 = arith.constant 0 : i32
    %c0_i32_2 = arith.constant 0 : i32
    return %c0_i32, %c0_i32_0, %c0_i32_1 : i32, i32, i32
  }
  func.func @transform_3(%arg0: i32) -> (i32, i32, i32) {
    %c0_i32 = arith.constant 0 : i32
    %c0_i32_0 = arith.constant 0 : i32
    %c0_i32_1 = arith.constant 0 : i32
    return %arg0, %c0_i32, %c0_i32_0 : i32, i32, i32
  }
  func.func @transform_4(%arg0: i32) -> (i32, i32, i32) {
    %c0_i32 = arith.constant 0 : i32
    %c0_i32_0 = arith.constant 0 : i32
    %c0_i32_1 = arith.constant 0 : i32
    return %arg0, %c0_i32, %c0_i32_0 : i32, i32, i32
  }
  func.func @transform_5(%arg0: i32) -> (i32, i32, i32) {
    %c0_i32 = arith.constant 0 : i32
    %c0_i32_0 = arith.constant 0 : i32
    %c0_i32_1 = arith.constant 0 : i32
    return %arg0, %c0_i32, %c0_i32_0 : i32, i32, i32
  }
}

</mosaic_0001>

<llo_original>
// kernel: tpu_custom_call.1
$region0: #{tpu_custom_call.1}
  #allocation0 [shape = 'u32[]', space=smem, size = 0x4, offset = 0x4, fixed_abs, tag = 'smem constant byte address 0x4 - core index']
  #allocation1 [shape = 'u32[144,128]{1,0:T(1,128)}', space=vmem, size = 0x12000, scoped, tag = 'internal scratch']
  %s0 = inlined_call_operand.hbm [shape: f32[2,8,32], index: 0, kind: input, shape index: {}]
  %s1 = inlined_call_operand.hbm [shape: f32[3,32,32], index: 1, kind: input, shape index: {}]
  %s2 = inlined_call_operand.vmem [shape: f32[3,1,32], index: 2, kind: input, shape index: {}]
  %s3 = inlined_call_operand.hbm [shape: f32[2,1,256], index: 3, kind: output, shape index: {0}]
  %s4 = inlined_call_operand.hbm [shape: f32[2,1,64], index: 4, kind: output, shape index: {1}]
  %s5 = inlined_call_operand.hbm [shape: f32[2,1,64], index: 5, kind: output, shape index: {2}]
  %6 = xla_tuple %s3, %s4, %s5
  %s7 = sld [smem:[#allocation0]]
  $region69: #{tpu_custom_call.1} parent=0
    _
  %s9 = ssub.s32 1, %s7
  %s10 = scalar_select 0, %s9, %s7
  $region1: #{tpu_custom_call.1} parent=0
    #allocation2 [shape = 'u8[8192]{0}', space=vmem, size = 0x2000, scoped, tag = 'input window, operand 0']
    #allocation3 [shape = 's32[2]{0}', space=sflag, size = 0x8, scoped, tag = 'scoped memory for tpu_custom_call.1']
    #allocation4 [shape = 's32[2]{0}', space=sflag, size = 0x8, scoped, tag = 'scoped memory for tpu_custom_call.1']
    #allocation5 [shape = 'u8[49152]{0}', space=vmem, size = 0xc000, scoped, tag = 'input window, operand 1, single buffered']
    #allocation6 [shape = 's32[1]{0}', space=sflag, size = 0x4, scoped, tag = 'scoped memory for tpu_custom_call.1']
    #allocation7 [shape = 'u8[2048]{0}', space=vmem, size = 0x800, scoped, tag = 'output window, operand 0']
    #allocation8 [shape = 'u8[1024]{0}', space=vmem, size = 0x400, scoped, tag = 'output window, operand 1']
    #allocation9 [shape = 's32[2]{0}', space=sflag, size = 0x8, scoped, tag = 'scoped memory for tpu_custom_call.1']
    #allocation10 [shape = 'u8[1024]{0}', space=vmem, size = 0x400, scoped, tag = 'output window, operand 2']
    %11 = vsyncpa [#allocation3], 0
    %s12 = scalar_lea.sflag [#allocation3], 1
    %13 = vsyncpa %s12, 0
    %14 = vsyncpa [#allocation6], 0
    %15 = vsyncpa [#allocation4], 0
    %s16 = scalar_lea.sflag [#allocation4], 1
    %17 = vsyncpa %s16, 0
    %18 = vsyncpa [#allocation9], 0
    %s19 = scalar_lea.sflag [#allocation9], 1
    %20 = vsyncpa %s19, 0
    loop: start=0, step=1, limit=4
    $region2: #{tpu_custom_call.1} parent=1 // loop_pre_header
      _
    $region3: #{tpu_custom_call.1} parent=1 // loop_header
      %s22 = sphi 0, %s26
      %p23 = scmp.ge.s32.totalorder %s22, 4
      %s32 = sphi 0, %s34
      %s35 = sphi 0, %s32
      %s36 = sphi 0, %s35
      %s52 = sphi 0, %s36
      %s56 = sphi 0, %s56
      %s58 = sphi 0, %s56
      %s59 = sphi 0, %s58
      %s73 = sphi 0, %s59
      %s77 = sphi 0, %s77
      %s79 = sphi 0, %s77
      %s80 = sphi 0, %s79
      %s94 = sphi 0, %s80
      %s100 = sphi 0, %s102
      %s103 = sphi 0, %s100
      %s104 = sphi 0, %s103
      %s120 = sphi 0, %s104
      %s126 = sphi 0, %s128
      %s129 = sphi 0, %s126
      %s130 = sphi 0, %s129
      %s146 = sphi 0, %s130
      %s152 = sphi 0, %s154
      %s155 = sphi 0, %s152
      %s156 = sphi 0, %s155
      %s172 = sphi 0, %s156
    $region4: #{tpu_custom_call.1} parent=1 // loop_header_branch
      %25 = sbr.rel (%p23) target = $region8
    $region5: #{tpu_custom_call.1} parent=1 // loop_body
      %s27 = ssub.s32 %s22, 1
      %s28 = ssub.s32 %s22, 2
      %s29 = sadd.s32 %s22, 1
      %s30 = ssub.s32 %s22, %s29
      %p31 = scmp.eq.s32.totalorder %s30, 0
      %s33 = sadd.s32 %s32, 1
      %s34 = scalar_select %p31, %s32, %s33
      %p37 = pneg %p31
      %p38 = scmp.eq.s32.totalorder %s22, 1
      %p39 = por %p37, %p38
      %p40 = scmp.ne.s32.totalorder %s32, %s35
      %p41 = scmp.eq.s32.totalorder %s22, 0
      %p42 = por %p40, %p41
      %p43 = scmp.ne.s32.totalorder %s32, %s35
      %p44 = scmp.eq.s32.totalorder %s27, 1
      %p45 = por %p43, %p44
      %p46 = scmp.ne.s32.totalorder %s35, %s36
      %p47 = scmp.eq.s32.totalorder %s27, 0
      %p48 = por %p46, %p47
      %p49 = scmp.ne.s32.totalorder %s35, %s36
      %p50 = scmp.eq.s32.totalorder %s28, 1
      %p51 = por %p49, %p50
      %p53 = scmp.ne.s32.totalorder %s36, %s52
      %p54 = scmp.eq.s32.totalorder %s28, 0
      %p55 = por %p53, %p54
      %s57 = sadd.s32 %s56, 1
      %p60 = scmp.eq.s32.totalorder %s22, 1
      %p61 = scmp.ne.s32.totalorder %s56, %s58
      %p62 = scmp.eq.s32.totalorder %s22, 0
      %p63 = por %p61, %p62
      %p64 = scmp.ne.s32.totalorder %s56, %s58
      %p65 = scmp.eq.s32.totalorder %s27, 1
      %p66 = por %p64, %p65
      %p67 = scmp.ne.s32.totalorder %s58, %s59
      %p68 = scmp.eq.s32.totalorder %s27, 0
      %p69 = por %p67, %p68
      %p70 = scmp.ne.s32.totalorder %s58, %s59
      %p71 = scmp.eq.s32.totalorder %s28, 1
      %p72 = por %p70, %p71
      %p74 = scmp.ne.s32.totalorder %s59, %s73
      %p75 = scmp.eq.s32.totalorder %s28, 0
      %p76 = por %p74, %p75
      %s78 = sadd.s32 %s77, 1
      %p81 = scmp.eq.s32.totalorder %s22, 1
      %p82 = scmp.ne.s32.totalorder %s77, %s79
      %p83 = scmp.eq.s32.totalorder %s22, 0
      %p84 = por %p82, %p83
      %p85 = scmp.ne.s32.totalorder %s77, %s79
      %p86 = scmp.eq.s32.totalorder %s27, 1
      %p87 = por %p85, %p86
      %p88 = scmp.ne.s32.totalorder %s79, %s80
      %p89 = scmp.eq.s32.totalorder %s27, 0
      %p90 = por %p88, %p89
      %p91 = scmp.ne.s32.totalorder %s79, %s80
      %p92 = scmp.eq.s32.totalorder %s28, 1
      %p93 = por %p91, %p92
      %p95 = scmp.ne.s32.totalorder %s80, %s94
      %p96 = scmp.eq.s32.totalorder %s28, 0
      %p97 = por %p95, %p96
      %s98 = ssub.s32 %s22, %s29
      %p99 = scmp.eq.s32.totalorder %s98, 0
      %s101 = sadd.s32 %s100, 1
      %s102 = scalar_select %p99, %s100, %s101
      %p105 = pneg %p99
      %p106 = scmp.eq.s32.totalorder %s22, 1
      %p107 = por %p105, %p106
      %p108 = scmp.ne.s32.totalorder %s100, %s103
      %p109 = scmp.eq.s32.totalorder %s22, 0
      %p110 = por %p108, %p109
      %p111 = scmp.ne.s32.totalorder %s100, %s103
      %p112 = scmp.eq.s32.totalorder %s27, 1
      %p113 = por %p111, %p112
      %p114 = scmp.ne.s32.totalorder %s103, %s104
      %p115 = scmp.eq.s32.totalorder %s27, 0
      %p116 = por %p114, %p115
      %p117 = scmp.ne.s32.totalorder %s103, %s104
      %p118 = scmp.eq.s32.totalorder %s28, 1
      %p119 = por %p117, %p118
      %p121 = scmp.ne.s32.totalorder %s104, %s120
      %p122 = scmp.eq.s32.totalorder %s28, 0
      %p123 = por %p121, %p122
      %s124 = ssub.s32 %s22, %s29
      %p125 = scmp.eq.s32.totalorder %s124, 0
      %s127 = sadd.s32 %s126, 1
      %s128 = scalar_select %p125, %s126, %s127
      %p131 = pneg %p125
      %p132 = scmp.eq.s32.totalorder %s22, 1
      %p133 = por %p131, %p132
      %p134 = scmp.ne.s32.totalorder %s126, %s129
      %p135 = scmp.eq.s32.totalorder %s22, 0
      %p136 = por %p134, %p135
      %p137 = scmp.ne.s32.totalorder %s126, %s129
      %p138 = scmp.eq.s32.totalorder %s27, 1
      %p139 = por %p137, %p138
      %p140 = scmp.ne.s32.totalorder %s129, %s130
      %p141 = scmp.eq.s32.totalorder %s27, 0
      %p142 = por %p140, %p141
      %p143 = scmp.ne.s32.totalorder %s129, %s130
      %p144 = scmp.eq.s32.totalorder %s28, 1
      %p145 = por %p143, %p144
      %p147 = scmp.ne.s32.totalorder %s130, %s146
      %p148 = scmp.eq.s32.totalorder %s28, 0
      %p149 = por %p147, %p148
      %s150 = ssub.s32 %s22, %s29
      %p151 = scmp.eq.s32.totalorder %s150, 0
      %s153 = sadd.s32 %s152, 1
      %s154 = scalar_select %p151, %s152, %s153
      %p157 = pneg %p151
      %p158 = scmp.eq.s32.totalorder %s22, 1
      %p159 = por %p157, %p158
      %p160 = scmp.ne.s32.totalorder %s152, %s155
      %p161 = scmp.eq.s32.totalorder %s22, 0
      %p162 = por %p160, %p161
      %p163 = scmp.ne.s32.totalorder %s152, %s155
      %p164 = scmp.eq.s32.totalorder %s27, 1
      %p165 = por %p163, %p164
      %p166 = scmp.ne.s32.totalorder %s155, %s156
      %p167 = scmp.eq.s32.totalorder %s27, 0
      %p168 = por %p166, %p167
      %p169 = scmp.ne.s32.totalorder %s155, %s156
      %p170 = scmp.eq.s32.totalorder %s28, 1
      %p171 = por %p169, %p170
      %p173 = scmp.ne.s32.totalorder %s156, %s172
      %p174 = scmp.eq.s32.totalorder %s28, 0
      %p175 = por %p173, %p174
      %p176 = scmp.le.s32.totalorder 1, %s22
      %p177 = scmp.lt.s32.totalorder %s22, 3
      %p178 = pnand %p176, %p177
      %p179 = pneg %p178
      // Predicated region
      $region9: #{tpu_custom_call.1} parent=5 // pred_check
        _
      $region10: #{tpu_custom_call.1} parent=5 // pred_check_branch
        %181 = sbr.rel (%p178) target = $region12
      $region11: #{tpu_custom_call.1} parent=5 // pred_region
        %s182 = ssub.s32 %s22, 1
        // Predicated region
        $region13: #{tpu_custom_call.1} parent=11 // pred_check
          %p183 = pneg %p69
        $region14: #{tpu_custom_call.1} parent=11 // pred_check_branch
          %185 = sbr.rel (%p183) target = $region16
        $region15: #{tpu_custom_call.1} parent=11 // pred_region
          %s187 = ssub.s32 1536, 1536
          %188 = vsyncadd [#allocation6], %s187
          %s189 = sshll.u32 [#allocation5], 4
          %s190 = int_to_ptr.vmem [resolvable:$true] %s189
          %195 = dma.hbm_to_vmem [thread:$0]  %s1, 1536, %s190, [#allocation6], 128, 128, 8
        $region16: #{tpu_custom_call.1} parent=11 // pred_fallthru
          _
        // Predicated region
        $region17: #{tpu_custom_call.1} parent=11 // pred_check
          %p196 = pneg %p90
        $region18: #{tpu_custom_call.1} parent=11 // pred_check_branch
          %198 = sbr.rel (%p196) target = $region20
        $region19: #{tpu_custom_call.1} parent=11 // pred_region
          _
        $region20: #{tpu_custom_call.1} parent=11 // pred_fallthru
          _
      $region12: #{tpu_custom_call.1} parent=5 // pred_fallthru
        _
      %p199 = scmp.lt.s32.totalorder %s22, 2
      // Predicated region
      $region21: #{tpu_custom_call.1} parent=5 // pred_check
        %p200 = pneg %p199
      $region22: #{tpu_custom_call.1} parent=5 // pred_check_branch
        %202 = sbr.rel (%p200) target = $region24
      $region23: #{tpu_custom_call.1} parent=5 // pred_region
        // Predicated region
        $region25: #{tpu_custom_call.1} parent=23 // pred_check
          %p203 = pneg %p42
        $region26: #{tpu_custom_call.1} parent=23 // pred_check_branch
          %205 = sbr.rel (%p203) target = $region28
        $region27: #{tpu_custom_call.1} parent=23 // pred_region
          %s206 = sand.u32 %s32, 1
          %s207 = scalar_lea.sflag [#allocation3], %s206
          %s208 = sand.u32 %s32, 1
          %s209 = smul.addr %s208, 8
          %s210 = scalar_lea.vmem [#allocation2], %s209
          %s212 = ssub.s32 128, 128
          %213 = vsyncadd %s207, %s212
          %s214 = smul.addr %s22, 128
          %s215 = scalar_lea.hbm %s0, %s214
          %s217 = sshll.u32 %s210, 4
          %s218 = int_to_ptr.vmem [resolvable:$true] %s217
          %220 = dma.hbm_to_vmem [thread:$0]  %s215, 128, %s218, %s207
        $region28: #{tpu_custom_call.1} parent=23 // pred_fallthru
          _
      $region24: #{tpu_custom_call.1} parent=5 // pred_fallthru
        _
      %p221 = scmp.le.s32.totalorder 1, %s22
      %p222 = scmp.lt.s32.totalorder %s22, 3
      %p223 = pnand %p221, %p222
      %p224 = pneg %p223
      // Predicated region
      $region29: #{tpu_custom_call.1} parent=5 // pred_check
        _
      $region30: #{tpu_custom_call.1} parent=5 // pred_check_branch
        %226 = sbr.rel (%p223) target = $region32
      $region31: #{tpu_custom_call.1} parent=5 // pred_region
        %s227 = ssub.s32 %s22, 1
        %s228 = sand.u32 %s35, 1
        %s229 = scalar_lea.sflag [#allocation3], %s228
        %s230 = sand.u32 %s35, 1
        %s231 = smul.addr %s230, 8
        %s232 = scalar_lea.vmem [#allocation2], %s231
        // Predicated region
        $region33: #{tpu_custom_call.1} parent=31 // pred_check
          %p233 = pneg %p48
        $region34: #{tpu_custom_call.1} parent=31 // pred_check_branch
          %235 = sbr.rel (%p233) target = $region36
        $region35: #{tpu_custom_call.1} parent=31 // pred_region
          %236 = dma.done %s229, 128
        $region36: #{tpu_custom_call.1} parent=31 // pred_fallthru
          _
        // Predicated region
        $region37: #{tpu_custom_call.1} parent=31 // pred_check
          %p237 = pneg %p69
        $region38: #{tpu_custom_call.1} parent=31 // pred_check_branch
          %239 = sbr.rel (%p237) target = $region40
        $region39: #{tpu_custom_call.1} parent=31 // pred_region
          %240 = dma.done [#allocation6], 1536
        $region40: #{tpu_custom_call.1} parent=31 // pred_fallthru
          _
        %s241 = sand.u32 %s35, 1
        %s242 = scalar_lea.sflag [#allocation3], %s241
        %s243 = sand.u32 %s35, 1
        %s244 = smul.addr %s243, 8
        %s245 = scalar_lea.vmem [#allocation2], %s244
        %p246 = pneg %p48
        %p247 = pneg %p45
        %p248 = pneg %p69
        %p249 = pneg %p66
        %p250 = pneg %p90
        %p251 = pneg %p87
        %p252 = pneg %p116
        %p253 = pneg %p113
        %s254 = sand.u32 %s103, 1
        %s255 = scalar_lea.sflag [#allocation4], %s254
        %s256 = sand.u32 %s103, 1
        %s257 = smul.addr %s256, 2
        %s258 = scalar_lea.vmem [#allocation7], %s257
        %p259 = pneg %p142
        %p260 = pneg %p139
        %s261 = sand.u32 %s27, 1
        %s262 = scalar_lea.sflag [#allocation9], %s261
        %s263 = sand.u32 %s129, 1
        %s264 = scalar_lea.vmem [#allocation8], %s263
        %p265 = pneg %p168
        %p266 = pneg %p165
        %s267 = sand.u32 %s27, 1
        %s268 = scalar_lea.sflag [#allocation9], %s267
        %s269 = sand.u32 %s155, 1
        %s270 = scalar_lea.vmem [#allocation10], %s269
        %v271 = vld [vmem:[%s232] sm:$0xff]
        %v272 = vld [vmem:[#allocation5] sm:$0xff]
        %v273 = vld [vmem:[#allocation5 + $0x8] sm:$0xff]
        %v274 = vld [vmem:[#allocation5 + $0x10] sm:$0xff]
        %v275 = vld [vmem:[#allocation5 + $0x18] sm:$0xff]
        %v276 = vld [vmem:[%s2] sm:$0x1]
        %v278 = vlaneseq
        %v279 = vshrl.u32 %v278, 7
        %v280 = vsub.s32 0, %v279
        %v281 = vrot.slane %v276, %v280
        %vm283 = vcmask 261120
        %v285 = vsel %vm283, %v271, 0
        %v288 = vsel %vm283, %v272, 0
        %v291 = vsel %vm283, %v273, 0
        %v294 = vsel %vm283, %v274, 0
        %v297 = vsel %vm283, %v275, 0
        %299 = vmatprep.subr.mxu0 0.0
        %300 = vmatpush1.xpose.msra.mxu0 %v288
        %301 = vmatprep.subr.mxu0 0.0
        %302 = vmatpush1.xpose.msra.mxu0 %v291
        %303 = vmatprep.subr.mxu0 0.0
        %304 = vmatpush1.xpose.msra.mxu0 %v294
        %305 = vmatprep.subr.mxu0 0.0
        %306 = vmatpush1.xpose.msra.mxu0 %v297
        %307 = vmatprep.subr.mxu0 0.0
        %308 = vmatpush1.xpose.msra.mxu0 0.0
        %309 = vmatprep.subr.mxu0 0.0
        %310 = vmatpush1.xpose.msra.mxu0 0.0
        %311 = vmatprep.subr.mxu0 0.0
        %312 = vmatpush1.xpose.msra.mxu0 0.0
        %313 = vmatprep.subr.mxu0 0.0
        %314 = vmatpush1.xpose.msra.mxu0 0.0
        %315 = vmatprep.subr.mxu0 0.0
        %316 = vmatpush1.xpose.msra.mxu0 0.0
        %317 = vmatprep.subr.mxu0 0.0
        %318 = vmatpush1.xpose.msra.mxu0 0.0
        %319 = vmatprep.subr.mxu0 0.0
        %320 = vmatpush1.xpose.msra.mxu0 0.0
        %321 = vmatprep.subr.mxu0 0.0
        %322 = vmatpush1.xpose.msra.mxu0 0.0
        %323 = vmatprep.subr.mxu0 0.0
        %324 = vmatpush1.xpose.msra.mxu0 0.0
        %325 = vmatprep.subr.mxu0 0.0
        %326 = vmatpush1.xpose.msra.mxu0 0.0
        %327 = vmatprep.subr.mxu0 0.0
        %328 = vmatpush1.xpose.msra.mxu0 0.0
        %329 = vmatprep.subr.mxu0 0.0
        %330 = vmatpush1.xpose.msra.mxu0 0.0
        %331 = vmatprep.subr.mxu0 0.0
        %332 = vmatpush1.xpose.msra.mxu0 0.0
        %333 = vmatprep.subr.mxu0 0.0
        %334 = vmatpush1.xpose.msra.mxu0 0.0
        %335 = vmatprep.subr.mxu0 0.0
        %336 = vmatpush1.xpose.msra.mxu0 0.0
        %337 = vmatprep.subr.mxu0 0.0
        %338 = vmatpush1.xpose.msra.mxu0 0.0
        %339 = vmatprep.subr.mxu0 0.0
        %340 = vmatpush1.xpose.msra.mxu0 0.0
        %341 = vmatprep.subr.mxu0 0.0
        %342 = vmatpush1.xpose.msra.mxu0 0.0
        %343 = vmatprep.subr.mxu0 0.0
        %344 = vmatpush1.xpose.msra.mxu0 0.0
        %345 = vmatprep.subr.mxu0 0.0
        %346 = vmatpush1.xpose.msra.mxu0 0.0
        %347 = vmatprep.subr.mxu0 0.0
        %348 = vmatpush1.xpose.msra.mxu0 0.0
        %349 = vmatprep.subr.mxu0 0.0
        %350 = vmatpush1.xpose.msra.mxu0 0.0
        %351 = vmatprep.subr.mxu0 0.0
        %352 = vmatpush1.xpose.msra.mxu0 0.0
        %353 = vmatprep.subr.mxu0 0.0
        %354 = vmatpush1.xpose.msra.mxu0 0.0
        %355 = vmatprep.subr.mxu0 0.0
        %356 = vmatpush1.xpose.msra.mxu0 0.0
        %357 = vmatprep.subr.mxu0 0.0
        %358 = vmatpush1.xpose.msra.mxu0 0.0
        %359 = vmatprep.subr.mxu0 0.0
        %360 = vmatpush1.xpose.msra.mxu0 0.0
        %361 = vmatprep.subr.mxu0 0.0
        %362 = vmatpush1.xpose.msra.mxu0 0.0
        %363 = vmatprep.mubr.f32.mxu0 0.0
        %364 = vmatmul.mubr.f32.gmra.mrb[0].mxu0 %v285
        %v365 = vpop.f32.mrb[0].mxu0
        %v366 = vadd.f32 %v281, %v365
        %v367 = vpop.f32.mrb[0].mxu0
        %368 = vdwg.mxu0
        %s369 = scalar_lea.vmem [#allocation5], 32
        %v370 = vld [vmem:[%s369] sm:$0xff]
        %v371 = vld [vmem:[%s369 + $0x8] sm:$0xff]
        %v372 = vld [vmem:[%s369 + $0x10] sm:$0xff]
        %v373 = vld [vmem:[%s369 + $0x18] sm:$0xff]
        %s374 = scalar_lea.vmem %s2, 1
        %v375 = vld [vmem:[%s374] sm:$0x1]
        %v377 = vlaneseq
        %v378 = vshrl.u32 %v377, 7
        %v379 = vsub.s32 0, %v378
        %v380 = vrot.slane %v375, %v379
        %v383 = vsel %vm283, %v370, 0
        %v386 = vsel %vm283, %v371, 0
        %v389 = vsel %vm283, %v372, 0
        %v392 = vsel %vm283, %v373, 0
        %394 = vmatprep.subr.mxu0 0.0
        %395 = vmatpush1.xpose.msra.mxu0 %v383
        %396 = vmatprep.subr.mxu0 0.0
        %397 = vmatpush1.xpose.msra.mxu0 %v386
        %398 = vmatprep.subr.mxu0 0.0
        %399 = vmatpush1.xpose.msra.mxu0 %v389
        %400 = vmatprep.subr.mxu0 0.0
        %401 = vmatpush1.xpose.msra.mxu0 %v392
        %402 = vmatprep.subr.mxu0 0.0
        %403 = vmatpush1.xpose.msra.mxu0 0.0
        %404 = vmatprep.subr.mxu0 0.0
        %405 = vmatpush1.xpose.msra.mxu0 0.0
        %406 = vmatprep.subr.mxu0 0.0
        %407 = vmatpush1.xpose.msra.mxu0 0.0
        %408 = vmatprep.subr.mxu0 0.0
        %409 = vmatpush1.xpose.msra.mxu0 0.0
        %410 = vmatprep.subr.mxu0 0.0
        %411 = vmatpush1.xpose.msra.mxu0 0.0
        %412 = vmatprep.subr.mxu0 0.0
        %413 = vmatpush1.xpose.msra.mxu0 0.0
        %414 = vmatprep.subr.mxu0 0.0
        %415 = vmatpush1.xpose.msra.mxu0 0.0
        %416 = vmatprep.subr.mxu0 0.0
        %417 = vmatpush1.xpose.msra.mxu0 0.0
        %418 = vmatprep.subr.mxu0 0.0
        %419 = vmatpush1.xpose.msra.mxu0 0.0
        %420 = vmatprep.subr.mxu0 0.0
        %421 = vmatpush1.xpose.msra.mxu0 0.0
        %422 = vmatprep.subr.mxu0 0.0
        %423 = vmatpush1.xpose.msra.mxu0 0.0
        %424 = vmatprep.subr.mxu0 0.0
        %425 = vmatpush1.xpose.msra.mxu0 0.0
        %426 = vmatprep.subr.mxu0 0.0
        %427 = vmatpush1.xpose.msra.mxu0 0.0
        %428 = vmatprep.subr.mxu0 0.0
        %429 = vmatpush1.xpose.msra.mxu0 0.0
        %430 = vmatprep.subr.mxu0 0.0
        %431 = vmatpush1.xpose.msra.mxu0 0.0
        %432 = vmatprep.subr.mxu0 0.0
        %433 = vmatpush1.xpose.msra.mxu0 0.0
        %434 = vmatprep.subr.mxu0 0.0
        %435 = vmatpush1.xpose.msra.mxu0 0.0
        %436 = vmatprep.subr.mxu0 0.0
        %437 = vmatpush1.xpose.msra.mxu0 0.0
        %438 = vmatprep.subr.mxu0 0.0
        %439 = vmatpush1.xpose.msra.mxu0 0.0
        %440 = vmatprep.subr.mxu0 0.0
        %441 = vmatpush1.xpose.msra.mxu0 0.0
        %442 = vmatprep.subr.mxu0 0.0
        %443 = vmatpush1.xpose.msra.mxu0 0.0
        %444 = vmatprep.subr.mxu0 0.0
        %445 = vmatpush1.xpose.msra.mxu0 0.0
        %446 = vmatprep.subr.mxu0 0.0
        %447 = vmatpush1.xpose.msra.mxu0 0.0
        %448 = vmatprep.subr.mxu0 0.0
        %449 = vmatpush1.xpose.msra.mxu0 0.0
        %450 = vmatprep.subr.mxu0 0.0
        %451 = vmatpush1.xpose.msra.mxu0 0.0
        %452 = vmatprep.subr.mxu0 0.0
        %453 = vmatpush1.xpose.msra.mxu0 0.0
        %454 = vmatprep.subr.mxu0 0.0
        %455 = vmatpush1.xpose.msra.mxu0 0.0
        %456 = vmatprep.subr.mxu0 0.0
        %457 = vmatpush1.xpose.msra.mxu0 0.0
        %458 = vmatprep.mubr.f32.mxu0 0.0
        %459 = vmatmul.mubr.f32.gmra.mrb[0].mxu0 %v285
        %v460 = vpop.f32.mrb[0].mxu0
        %v461 = vadd.f32 %v380, %v460
        %v462 = vpop.f32.mrb[0].mxu0
        %463 = vdwg.mxu0
        %s464 = scalar_lea.vmem [#allocation5], 64
        %v465 = vld [vmem:[%s464] sm:$0xff]
        %v466 = vld [vmem:[%s464 + $0x8] sm:$0xff]
        %v467 = vld [vmem:[%s464 + $0x10] sm:$0xff]
        %v468 = vld [vmem:[%s464 + $0x18] sm:$0xff]
        %s469 = scalar_lea.vmem %s2, 2
        %v470 = vld [vmem:[%s469] sm:$0x1]
        %v472 = vlaneseq
        %v473 = vshrl.u32 %v472, 7
        %v474 = vsub.s32 0, %v473
        %v475 = vrot.slane %v470, %v474
        %v478 = vsel %vm283, %v465, 0
        %v481 = vsel %vm283, %v466, 0
        %v484 = vsel %vm283, %v467, 0
        %v487 = vsel %vm283, %v468, 0
        %489 = vmatprep.subr.mxu0 0.0
        %490 = vmatpush1.xpose.msra.mxu0 %v478
        %491 = vmatprep.subr.mxu0 0.0
        %492 = vmatpush1.xpose.msra.mxu0 %v481
        %493 = vmatprep.subr.mxu0 0.0
        %494 = vmatpush1.xpose.msra.mxu0 %v484
        %495 = vmatprep.subr.mxu0 0.0
        %496 = vmatpush1.xpose.msra.mxu0 %v487
        %497 = vmatprep.subr.mxu0 0.0
        %498 = vmatpush1.xpose.msra.mxu0 0.0
        %499 = vmatprep.subr.mxu0 0.0
        %500 = vmatpush1.xpose.msra.mxu0 0.0
        %501 = vmatprep.subr.mxu0 0.0
        %502 = vmatpush1.xpose.msra.mxu0 0.0
        %503 = vmatprep.subr.mxu0 0.0
        %504 = vmatpush1.xpose.msra.mxu0 0.0
        %505 = vmatprep.subr.mxu0 0.0
        %506 = vmatpush1.xpose.msra.mxu0 0.0
        %507 = vmatprep.subr.mxu0 0.0
        %508 = vmatpush1.xpose.msra.mxu0 0.0
        %509 = vmatprep.subr.mxu0 0.0
        %510 = vmatpush1.xpose.msra.mxu0 0.0
        %511 = vmatprep.subr.mxu0 0.0
        %512 = vmatpush1.xpose.msra.mxu0 0.0
        %513 = vmatprep.subr.mxu0 0.0
        %514 = vmatpush1.xpose.msra.mxu0 0.0
        %515 = vmatprep.subr.mxu0 0.0
        %516 = vmatpush1.xpose.msra.mxu0 0.0
        %517 = vmatprep.subr.mxu0 0.0
        %518 = vmatpush1.xpose.msra.mxu0 0.0
        %519 = vmatprep.subr.mxu0 0.0
        %520 = vmatpush1.xpose.msra.mxu0 0.0
        %521 = vmatprep.subr.mxu0 0.0
        %522 = vmatpush1.xpose.msra.mxu0 0.0
        %523 = vmatprep.subr.mxu0 0.0
        %524 = vmatpush1.xpose.msra.mxu0 0.0
        %525 = vmatprep.subr.mxu0 0.0
        %526 = vmatpush1.xpose.msra.mxu0 0.0
        %527 = vmatprep.subr.mxu0 0.0
        %528 = vmatpush1.xpose.msra.mxu0 0.0
        %529 = vmatprep.subr.mxu0 0.0
        %530 = vmatpush1.xpose.msra.mxu0 0.0
        %531 = vmatprep.subr.mxu0 0.0
        %532 = vmatpush1.xpose.msra.mxu0 0.0
        %533 = vmatprep.subr.mxu0 0.0
        %534 = vmatpush1.xpose.msra.mxu0 0.0
        %535 = vmatprep.subr.mxu0 0.0
        %536 = vmatpush1.xpose.msra.mxu0 0.0
        %537 = vmatprep.subr.mxu0 0.0
        %538 = vmatpush1.xpose.msra.mxu0 0.0
        %539 = vmatprep.subr.mxu0 0.0
        %540 = vmatpush1.xpose.msra.mxu0 0.0
        %541 = vmatprep.subr.mxu0 0.0
        %542 = vmatpush1.xpose.msra.mxu0 0.0
        %543 = vmatprep.subr.mxu0 0.0
        %544 = vmatpush1.xpose.msra.mxu0 0.0
        %545 = vmatprep.subr.mxu0 0.0
        %546 = vmatpush1.xpose.msra.mxu0 0.0
        %547 = vmatprep.subr.mxu0 0.0
        %548 = vmatpush1.xpose.msra.mxu0 0.0
        %549 = vmatprep.subr.mxu0 0.0
        %550 = vmatpush1.xpose.msra.mxu0 0.0
        %551 = vmatprep.subr.mxu0 0.0
        %552 = vmatpush1.xpose.msra.mxu0 0.0
        %553 = vmatprep.mubr.f32.mxu0 0.0
        %554 = vmatmul.mubr.f32.gmra.mrb[0].mxu0 %v285
        %v555 = vpop.f32.mrb[0].mxu0
        %v556 = vadd.f32 %v475, %v555
        %v557 = vpop.f32.mrb[0].mxu0
        %558 = vdwg.mxu0
        %v560 = vsel %vm283, %v366, 0
        %v563 = vsel %vm283, %v461, 0
        %565 = vmatprep.subr.mxu0 0.0
        %566 = vmatpush1.xpose.msra.mxu0 %v563
        %567 = vmatprep.subr.mxu0 0.0
        %568 = vmatpush1.xpose.msra.mxu0 0.0
        %569 = vmatprep.subr.mxu0 0.0
        %570 = vmatpush1.xpose.msra.mxu0 0.0
        %571 = vmatprep.subr.mxu0 0.0
        %572 = vmatpush1.xpose.msra.mxu0 0.0
        %573 = vmatprep.subr.mxu0 0.0
        %574 = vmatpush1.xpose.msra.mxu0 0.0
        %575 = vmatprep.subr.mxu0 0.0
        %576 = vmatpush1.xpose.msra.mxu0 0.0
        %577 = vmatprep.subr.mxu0 0.0
        %578 = vmatpush1.xpose.msra.mxu0 0.0
        %579 = vmatprep.subr.mxu0 0.0
        %580 = vmatpush1.xpose.msra.mxu0 0.0
        %581 = vmatprep.subr.mxu0 0.0
        %582 = vmatpush1.xpose.msra.mxu0 0.0
        %583 = vmatprep.subr.mxu0 0.0
        %584 = vmatpush1.xpose.msra.mxu0 0.0
        %585 = vmatprep.subr.mxu0 0.0
        %586 = vmatpush1.xpose.msra.mxu0 0.0
        %587 = vmatprep.subr.mxu0 0.0
        %588 = vmatpush1.xpose.msra.mxu0 0.0
        %589 = vmatprep.subr.mxu0 0.0
        %590 = vmatpush1.xpose.msra.mxu0 0.0
        %591 = vmatprep.subr.mxu0 0.0
        %592 = vmatpush1.xpose.msra.mxu0 0.0
        %593 = vmatprep.subr.mxu0 0.0
        %594 = vmatpush1.xpose.msra.mxu0 0.0
        %595 = vmatprep.subr.mxu0 0.0
        %596 = vmatpush1.xpose.msra.mxu0 0.0
        %597 = vmatprep.subr.mxu0 0.0
        %598 = vmatpush1.xpose.msra.mxu0 0.0
        %599 = vmatprep.subr.mxu0 0.0
        %600 = vmatpush1.xpose.msra.mxu0 0.0
        %601 = vmatprep.subr.mxu0 0.0
        %602 = vmatpush1.xpose.msra.mxu0 0.0
        %603 = vmatprep.subr.mxu0 0.0
        %604 = vmatpush1.xpose.msra.mxu0 0.0
        %605 = vmatprep.subr.mxu0 0.0
        %606 = vmatpush1.xpose.msra.mxu0 0.0
        %607 = vmatprep.subr.mxu0 0.0
        %608 = vmatpush1.xpose.msra.mxu0 0.0
        %609 = vmatprep.subr.mxu0 0.0
        %610 = vmatpush1.xpose.msra.mxu0 0.0
        %611 = vmatprep.subr.mxu0 0.0
        %612 = vmatpush1.xpose.msra.mxu0 0.0
        %613 = vmatprep.subr.mxu0 0.0
        %614 = vmatpush1.xpose.msra.mxu0 0.0
        %615 = vmatprep.subr.mxu0 0.0
        %616 = vmatpush1.xpose.msra.mxu0 0.0
        %617 = vmatprep.subr.mxu0 0.0
        %618 = vmatpush1.xpose.msra.mxu0 0.0
        %619 = vmatprep.subr.mxu0 0.0
        %620 = vmatpush1.xpose.msra.mxu0 0.0
        %621 = vmatprep.subr.mxu0 0.0
        %622 = vmatpush1.xpose.msra.mxu0 0.0
        %623 = vmatprep.subr.mxu0 0.0
        %624 = vmatpush1.xpose.msra.mxu0 0.0
        %625 = vmatprep.subr.mxu0 0.0
        %626 = vmatpush1.xpose.msra.mxu0 0.0
        %627 = vmatprep.subr.mxu0 0.0
        %628 = vmatpush1.xpose.msra.mxu0 0.0
        %629 = vmatprep.mubr.f32.mxu0 0.0
        %630 = vmatmul.mubr.f32.gmra.mrb[0].mxu0 %v560
        %v631 = vpop.f32.mrb[0].mxu0
        %v632 = vadd.f32 0.0, %v631
        %v633 = vpop.f32.mrb[0].mxu0
        %634 = vdwg.mxu0
        %v635 = vmul.f32 %v632, 0.17677669
        %vm636 = vcmask 64512
        %v637 = vsel %vm636, %v635, -inf
        %638 = vmax.xlane.f32.xlu0 %v637
        %v639 = vpop.xlane.xlu0 %638
        %v640 = vsub.f32 %v635, %v639
        %v641 = vmul.f32 %v640, 1.442695
        %v642 = vpow.pop %v641
        %v643 = vsel %vm636, %v642, 0.0
        %644 = vadd.xlane.f32.xlu0 %v643
        %v645 = vpop.xlane.xlu0 %644
        %v646 = vrcp.pop %v645
        %v647 = vmul.f32 %v642, %v646
        %v649 = vsel %vm636, %v647, 0
        %651 = vmatprep.subr.mxu0 0.0
        %652 = vmatpush1.msra.mxu0 %v556
        %653 = vmatprep.subr.mxu0 0.0
        %654 = vmatpush1.msra.mxu0 0.0
        %655 = vmatprep.subr.mxu0 0.0
        %656 = vmatpush1.msra.mxu0 0.0
        %657 = vmatprep.subr.mxu0 0.0
        %658 = vmatpush1.msra.mxu0 0.0
        %659 = vmatprep.subr.mxu0 0.0
        %660 = vmatpush1.msra.mxu0 0.0
        %661 = vmatprep.subr.mxu0 0.0
        %662 = vmatpush1.msra.mxu0 0.0
        %663 = vmatprep.subr.mxu0 0.0
        %664 = vmatpush1.msra.mxu0 0.0
        %665 = vmatprep.subr.mxu0 0.0
        %666 = vmatpush1.msra.mxu0 0.0
        %667 = vmatprep.subr.mxu0 0.0
        %668 = vmatpush1.msra.mxu0 0.0
        %669 = vmatprep.subr.mxu0 0.0
        %670 = vmatpush1.msra.mxu0 0.0
        %671 = vmatprep.subr.mxu0 0.0
        %672 = vmatpush1.msra.mxu0 0.0
        %673 = vmatprep.subr.mxu0 0.0
        %674 = vmatpush1.msra.mxu0 0.0
        %675 = vmatprep.subr.mxu0 0.0
        %676 = vmatpush1.msra.mxu0 0.0
        %677 = vmatprep.subr.mxu0 0.0
        %678 = vmatpush1.msra.mxu0 0.0
        %679 = vmatprep.subr.mxu0 0.0
        %680 = vmatpush1.msra.mxu0 0.0
        %681 = vmatprep.subr.mxu0 0.0
        %682 = vmatpush1.msra.mxu0 0.0
        %683 = vmatprep.subr.mxu0 0.0
        %684 = vmatpush1.msra.mxu0 0.0
        %685 = vmatprep.subr.mxu0 0.0
        %686 = vmatpush1.msra.mxu0 0.0
        %687 = vmatprep.subr.mxu0 0.0
        %688 = vmatpush1.msra.mxu0 0.0
        %689 = vmatprep.subr.mxu0 0.0
        %690 = vmatpush1.msra.mxu0 0.0
        %691 = vmatprep.subr.mxu0 0.0
        %692 = vmatpush1.msra.mxu0 0.0
        %693 = vmatprep.subr.mxu0 0.0
        %694 = vmatpush1.msra.mxu0 0.0
        %695 = vmatprep.subr.mxu0 0.0
        %696 = vmatpush1.msra.mxu0 0.0
        %697 = vmatprep.subr.mxu0 0.0
        %698 = vmatpush1.msra.mxu0 0.0
        %699 = vmatprep.subr.mxu0 0.0
        %700 = vmatpush1.msra.mxu0 0.0
        %701 = vmatprep.subr.mxu0 0.0
        %702 = vmatpush1.msra.mxu0 0.0
        %703 = vmatprep.subr.mxu0 0.0
        %704 = vmatpush1.msra.mxu0 0.0
        %705 = vmatprep.subr.mxu0 0.0
        %706 = vmatpush1.msra.mxu0 0.0
        %707 = vmatprep.subr.mxu0 0.0
        %708 = vmatpush1.msra.mxu0 0.0
        %709 = vmatprep.subr.mxu0 0.0
        %710 = vmatpush1.msra.mxu0 0.0
        %711 = vmatprep.subr.mxu0 0.0
        %712 = vmatpush1.msra.mxu0 0.0
        %713 = vmatprep.subr.mxu0 0.0
        %714 = vmatpush1.msra.mxu0 0.0
        %715 = vmatprep.mubr.f32.mxu0 0.0
        %716 = vmatmul.mubr.f32.gmra.mrb[0].mxu0 %v649
        %v717 = vpop.f32.mrb[0].mxu0
        %v718 = vadd.f32 0.0, %v717
        %v719 = vpop.f32.mrb[0].mxu0
        %720 = vdwg.mxu0
        %v721 = vcombine.high %v718, 0.0
        %v723 = vunpack.c.l.s4 1983009808
        %v724 = vunpack.c.0.s8 %v723
        %v725 = vlaneseq
        %v726 = vshrl.u32 %v725, 7
        %v727 = vsub.s32 %v724, %v726
        %v728 = vrot.slane %v718, %v727
        %v730 = vunpack.c.l.s4 1983009808
        %v731 = vunpack.c.0.s8 %v730
        %v732 = vlaneseq
        %v733 = vshrl.u32 %v732, 7
        %v734 = vsub.s32 %v731, %v733
        %v735 = vrot.slane %v721, %v734
        %v736 = vcombine.high %v728, 0.0
        %v738 = vunpack.c.l.s4 1934713408
        %v739 = vunpack.c.0.s8 %v738
        %v740 = vlaneseq
        %v741 = vshrl.u32 %v740, 7
        %v742 = vsub.s32 %v739, %v741
        %v743 = vrot.slane %v728, %v742
        %v745 = vunpack.c.l.s4 1934713408
        %v746 = vunpack.c.0.s8 %v745
        %v747 = vlaneseq
        %v748 = vshrl.u32 %v747, 7
        %v749 = vsub.s32 %v746, %v748
        %v750 = vrot.slane %v736, %v749
        %v751 = vcombine.high %v735, 0.0
        %v753 = vunpack.c.l.s4 1934713408
        %v754 = vunpack.c.0.s8 %v753
        %v755 = vlaneseq
        %v756 = vshrl.u32 %v755, 7
        %v757 = vsub.s32 %v754, %v756
        %v758 = vrot.slane %v735, %v757
        %v760 = vunpack.c.l.s4 1934713408
        %v761 = vunpack.c.0.s8 %v760
        %v762 = vlaneseq
        %v763 = vshrl.u32 %v762, 7
        %v764 = vsub.s32 %v761, %v763
        %v765 = vrot.slane %v751, %v764
        %v766 = vcombine.high %v743, 0.0
        %v767 = vcombine.high %v750, 0.0
        %v768 = vcombine.high %v758, 0.0
        %v769 = vcombine.high %v765, 0.0
        %771 = vrot.lane.b32.xlu0 %v766, 32
        %v772 = vpop.permute.xlu0 %771
        %775 = vrot.lane.b32.xlu0 %v750, 64
        %v776 = vpop.permute.xlu0 %775
        %779 = vrot.lane.b32.xlu0 %v767, 96
        %v780 = vpop.permute.xlu0 %779
        %783 = vrot.lane.b32.xlu0 %v768, 32
        %v784 = vpop.permute.xlu0 %783
        %787 = vrot.lane.b32.xlu0 %v765, 64
        %v788 = vpop.permute.xlu0 %787
        %791 = vrot.lane.b32.xlu0 %v769, 96
        %v792 = vpop.permute.xlu0 %791
        %v794 = vsel %vm283, %v743, %v772
        %vm795 = vcmask 523264
        %v796 = vsel %vm795, %v794, %v776
        %vm797 = vcmask 785408
        %v798 = vsel %vm797, %v796, %v780
        %v799 = vsel %vm283, %v758, %v784
        %v800 = vsel %vm795, %v799, %v788
        %v801 = vsel %vm797, %v800, %v792
        %v804 = vcombine.low %v798, %v801
        %v806 = vunpack.c.l.s4 1966171168
        %v807 = vunpack.c.0.s8 %v806
        %v808 = vlaneseq
        %v809 = vshrl.u32 %v808, 7
        %v810 = vsub.s32 %v807, %v809
        %v811 = vrot.slane %v804, %v810
        %v813 = vunpack.c.l.s4 1966171168
        %v814 = vunpack.c.0.s8 %v813
        %v815 = vlaneseq
        %v816 = vshrl.u32 %v815, 7
        %v817 = vsub.s32 %v814, %v816
        %v818 = vrot.slane %v811, %v817
        %v820 = vlaneseq
        %vm821 = vcmp.ge.s32.totalorder %v820, 0
        %vm822 = vcmp.lt.s32.totalorder %v820, 256
        %vm823 = vmand %vm821, %vm822
        %824 = vst.msk [vmem:[%s258] sm:$0x3] %vm823, %v818
        %v825 = vcombine.high %v635, 0.0
        %v827 = vunpack.c.l.s4 1983009808
        %v828 = vunpack.c.0.s8 %v827
        %v829 = vlaneseq
        %v830 = vshrl.u32 %v829, 7
        %v831 = vsub.s32 %v828, %v830
        %v832 = vrot.slane %v635, %v831
        %v834 = vunpack.c.l.s4 1983009808
        %v835 = vunpack.c.0.s8 %v834
        %v836 = vlaneseq
        %v837 = vshrl.u32 %v836, 7
        %v838 = vsub.s32 %v835, %v837
        %v839 = vrot.slane %v825, %v838
        %v840 = vcombine.high %v832, 0.0
        %v842 = vunpack.c.l.s4 1934713408
        %v843 = vunpack.c.0.s8 %v842
        %v844 = vlaneseq
        %v845 = vshrl.u32 %v844, 7
        %v846 = vsub.s32 %v843, %v845
        %v847 = vrot.slane %v832, %v846
        %v849 = vunpack.c.l.s4 1934713408
        %v850 = vunpack.c.0.s8 %v849
        %v851 = vlaneseq
        %v852 = vshrl.u32 %v851, 7
        %v853 = vsub.s32 %v850, %v852
        %v854 = vrot.slane %v840, %v853
        %v855 = vcombine.high %v839, 0.0
        %v857 = vunpack.c.l.s4 1934713408
        %v858 = vunpack.c.0.s8 %v857
        %v859 = vlaneseq
        %v860 = vshrl.u32 %v859, 7
        %v861 = vsub.s32 %v858, %v860
        %v862 = vrot.slane %v839, %v861
        %v864 = vunpack.c.l.s4 1934713408
        %v865 = vunpack.c.0.s8 %v864
        %v866 = vlaneseq
        %v867 = vshrl.u32 %v866, 7
        %v868 = vsub.s32 %v865, %v867
        %v869 = vrot.slane %v855, %v868
        %v870 = vcombine.high %v847, 0.0
        %v871 = vcombine.high %v854, 0.0
        %v872 = vcombine.high %v862, 0.0
        %v873 = vcombine.high %v869, 0.0
        %875 = vrot.lane.b32.xlu0 %v870, 8
        %v876 = vpop.permute.xlu0 %875
        %879 = vrot.lane.b32.xlu0 %v854, 16
        %v880 = vpop.permute.xlu0 %879
        %883 = vrot.lane.b32.xlu0 %v871, 24
        %v884 = vpop.permute.xlu0 %883
        %887 = vrot.lane.b32.xlu0 %v862, 32
        %v888 = vpop.permute.xlu0 %887
        %891 = vrot.lane.b32.xlu0 %v872, 40
        %v892 = vpop.permute.xlu0 %891
        %895 = vrot.lane.b32.xlu0 %v869, 48
        %v896 = vpop.permute.xlu0 %895
        %899 = vrot.lane.b32.xlu0 %v873, 56
        %v900 = vpop.permute.xlu0 %899
        %v902 = vsel %vm636, %v847, %v876
        %vm903 = vcmask 130048
        %v904 = vsel %vm903, %v902, %v880
        %vm905 = vcmask 195584
        %v906 = vsel %vm905, %v904, %v884
        %v907 = vsel %vm283, %v906, %v888
        %vm908 = vcmask 326656
        %v909 = vsel %vm908, %v907, %v892
        %vm910 = vcmask 392192
        %v911 = vsel %vm910, %v909, %v896
        %vm912 = vcmask 457728
        %v913 = vsel %vm912, %v911, %v900
        %vm914 = vcmask 516096
        %915 = vst.msk [vmem:[%s264] sm:$0x1] %vm914, %v913
        %v916 = vcombine.high %v647, 0.0
        %v918 = vunpack.c.l.s4 1983009808
        %v919 = vunpack.c.0.s8 %v918
        %v920 = vlaneseq
        %v921 = vshrl.u32 %v920, 7
        %v922 = vsub.s32 %v919, %v921
        %v923 = vrot.slane %v647, %v922
        %v925 = vunpack.c.l.s4 1983009808
        %v926 = vunpack.c.0.s8 %v925
        %v927 = vlaneseq
        %v928 = vshrl.u32 %v927, 7
        %v929 = vsub.s32 %v926, %v928
        %v930 = vrot.slane %v916, %v929
        %v931 = vcombine.high %v923, 0.0
        %v933 = vunpack.c.l.s4 1934713408
        %v934 = vunpack.c.0.s8 %v933
        %v935 = vlaneseq
        %v936 = vshrl.u32 %v935, 7
        %v937 = vsub.s32 %v934, %v936
        %v938 = vrot.slane %v923, %v937
        %v940 = vunpack.c.l.s4 1934713408
        %v941 = vunpack.c.0.s8 %v940
        %v942 = vlaneseq
        %v943 = vshrl.u32 %v942, 7
        %v944 = vsub.s32 %v941, %v943
        %v945 = vrot.slane %v931, %v944
        %v946 = vcombine.high %v930, 0.0
        %v948 = vunpack.c.l.s4 1934713408
        %v949 = vunpack.c.0.s8 %v948
        %v950 = vlaneseq
        %v951 = vshrl.u32 %v950, 7
        %v952 = vsub.s32 %v949, %v951
        %v953 = vrot.slane %v930, %v952
        %v955 = vunpack.c.l.s4 1934713408
        %v956 = vunpack.c.0.s8 %v955
        %v957 = vlaneseq
        %v958 = vshrl.u32 %v957, 7
        %v959 = vsub.s32 %v956, %v958
        %v960 = vrot.slane %v946, %v959
        %v961 = vcombine.high %v938, 0.0
        %v962 = vcombine.high %v945, 0.0
        %v963 = vcombine.high %v953, 0.0
        %v964 = vcombine.high %v960, 0.0
        %966 = vrot.lane.b32.xlu0 %v961, 8
        %v967 = vpop.permute.xlu0 %966
        %970 = vrot.lane.b32.xlu0 %v945, 16
        %v971 = vpop.permute.xlu0 %970
        %974 = vrot.lane.b32.xlu0 %v962, 24
        %v975 = vpop.permute.xlu0 %974
        %978 = vrot.lane.b32.xlu0 %v953, 32
        %v979 = vpop.permute.xlu0 %978
        %982 = vrot.lane.b32.xlu0 %v963, 40
        %v983 = vpop.permute.xlu0 %982
        %986 = vrot.lane.b32.xlu0 %v960, 48
        %v987 = vpop.permute.xlu0 %986
        %990 = vrot.lane.b32.xlu0 %v964, 56
        %v991 = vpop.permute.xlu0 %990
        %v993 = vsel %vm636, %v938, %v967
        %v994 = vsel %vm903, %v993, %v971
        %v995 = vsel %vm905, %v994, %v975
        %v996 = vsel %vm283, %v995, %v979
        %v997 = vsel %vm908, %v996, %v983
        %v998 = vsel %vm910, %v997, %v987
        %v999 = vsel %vm912, %v998, %v991
        %1000 = vst.msk [vmem:[%s270] sm:$0x1] %vm914, %v999
        %s1001 = sand.u32 %s103, 1
        %s1002 = scalar_lea.sflag [#allocation4], %s1001
        %s1003 = sand.u32 %s103, 1
        %s1004 = smul.addr %s1003, 2
        %s1005 = scalar_lea.vmem [#allocation7], %s1004
        %s1006 = sand.u32 %s27, 1
        %s1007 = scalar_lea.sflag [#allocation9], %s1006
        %s1008 = sand.u32 %s129, 1
        %s1009 = scalar_lea.vmem [#allocation8], %s1008
        %s1010 = sand.u32 %s27, 1
        %s1011 = scalar_lea.sflag [#allocation9], %s1010
        %s1012 = sand.u32 %s155, 1
        %s1013 = scalar_lea.vmem [#allocation10], %s1012
        // Predicated region
        $region41: #{tpu_custom_call.1} parent=31 // pred_check
          %p1014 = pneg %p113
        $region42: #{tpu_custom_call.1} parent=31 // pred_check_branch
          %1016 = sbr.rel (%p1014) target = $region44
        $region43: #{tpu_custom_call.1} parent=31 // pred_region
          %s1018 = ssub.s32 32, 32
          %1019 = vsyncadd %s1002, %s1018
          %s1020 = smul.addr %s27, 2
          %s1021 = smul.addr %s1020, 16
          %s1022 = scalar_lea.hbm %s3, %s1021
          %s1024 = sshll.u32 %s1005, 4
          %s1025 = int_to_ptr.vmem [resolvable:$true] %s1024
          %1027 = dma.vmem_to_hbm [thread:$0]  %s1025, 32, %s1022, %s1002
        $region44: #{tpu_custom_call.1} parent=31 // pred_fallthru
          _
        // Predicated region
        $region45: #{tpu_custom_call.1} parent=31 // pred_check
          %p1028 = pneg %p139
        $region46: #{tpu_custom_call.1} parent=31 // pred_check_branch
          %1030 = sbr.rel (%p1028) target = $region48
        $region47: #{tpu_custom_call.1} parent=31 // pred_region
          %s1032 = ssub.s32 16, 16
          %1033 = vsyncadd %s1007, %s1032
          %s1034 = smul.addr %s27, 16
          %s1035 = scalar_lea.hbm %s4, %s1034
          %s1037 = sshll.u32 %s1009, 4
          %s1038 = int_to_ptr.vmem [resolvable:$true] %s1037
          %1040 = dma.vmem_to_hbm [thread:$0]  %s1038, 16, %s1035, %s1007
        $region48: #{tpu_custom_call.1} parent=31 // pred_fallthru
          _
        // Predicated region
        $region49: #{tpu_custom_call.1} parent=31 // pred_check
          %p1041 = pneg %p165
        $region50: #{tpu_custom_call.1} parent=31 // pred_check_branch
          %1043 = sbr.rel (%p1041) target = $region52
        $region51: #{tpu_custom_call.1} parent=31 // pred_region
          %s1045 = ssub.s32 16, 16
          %1046 = vsyncadd %s1011, %s1045
          %s1047 = smul.addr %s27, 16
          %s1048 = scalar_lea.hbm %s5, %s1047
          %s1050 = sshll.u32 %s1013, 4
          %s1051 = int_to_ptr.vmem [resolvable:$true] %s1050
          %1053 = dma.vmem_to_hbm [thread:$0]  %s1051, 16, %s1048, %s1011
        $region52: #{tpu_custom_call.1} parent=31 // pred_fallthru
          _
      $region32: #{tpu_custom_call.1} parent=5 // pred_fallthru
        _
      %p1054 = scmp.le.s32.totalorder 2, %s22
      // Predicated region
      $region53: #{tpu_custom_call.1} parent=5 // pred_check
        %p1055 = pneg %p1054
      $region54: #{tpu_custom_call.1} parent=5 // pred_check_branch
        %1057 = sbr.rel (%p1055) target = $region56
      $region55: #{tpu_custom_call.1} parent=5 // pred_region
        %s1058 = ssub.s32 %s22, 2
        // Predicated region
        $region57: #{tpu_custom_call.1} parent=55 // pred_check
          %p1059 = pneg %p119
        $region58: #{tpu_custom_call.1} parent=55 // pred_check_branch
          %1061 = sbr.rel (%p1059) target = $region60
        $region59: #{tpu_custom_call.1} parent=55 // pred_region
          %s1062 = sand.u32 %s104, 1
          %s1063 = scalar_lea.sflag [#allocation4], %s1062
          %s1064 = sand.u32 %s104, 1
          %s1065 = smul.addr %s1064, 2
          %s1066 = scalar_lea.vmem [#allocation7], %s1065
          %1067 = dma.done %s1063, 32
        $region60: #{tpu_custom_call.1} parent=55 // pred_fallthru
          _
        // Predicated region
        $region61: #{tpu_custom_call.1} parent=55 // pred_check
          %p1068 = pneg %p145
        $region62: #{tpu_custom_call.1} parent=55 // pred_check_branch
          %1070 = sbr.rel (%p1068) target = $region64
        $region63: #{tpu_custom_call.1} parent=55 // pred_region
          %s1071 = sand.u32 %s28, 1
          %s1072 = scalar_lea.sflag [#allocation9], %s1071
          %s1073 = sand.u32 %s130, 1
          %s1074 = scalar_lea.vmem [#allocation8], %s1073
          %1075 = dma.done %s1072, 16
        $region64: #{tpu_custom_call.1} parent=55 // pred_fallthru
          _
        // Predicated region
        $region65: #{tpu_custom_call.1} parent=55 // pred_check
          %p1076 = pneg %p171
        $region66: #{tpu_custom_call.1} parent=55 // pred_check_branch
          %1078 = sbr.rel (%p1076) target = $region68
        $region67: #{tpu_custom_call.1} parent=55 // pred_region
          %s1079 = sand.u32 %s28, 1
          %s1080 = scalar_lea.sflag [#allocation9], %s1079
          %s1081 = sand.u32 %s156, 1
          %s1082 = scalar_lea.vmem [#allocation10], %s1081
          %1083 = dma.done %s1080, 16
        $region68: #{tpu_custom_call.1} parent=55 // pred_fallthru
          _
      $region56: #{tpu_custom_call.1} parent=5 // pred_fallthru
        _
    $region6: #{tpu_custom_call.1} parent=1 // loop_footer
      %s26 = sadd.s32 1, %s22
    $region7: #{tpu_custom_call.1} parent=1 // loop_footer_branch
      %21 = sbr.rel target = $region3
    $region8: #{tpu_custom_call.1} parent=1 // loop_exit
      _
    %1084 = vsyncpa [#allocation3], 1
    %s1085 = scalar_lea.sflag [#allocation3], 1
    %1086 = vsyncpa %s1085, 1
    %1087 = vsyncpa [#allocation6], 1
    %1088 = vsyncpa [#allocation4], 1
    %s1089 = scalar_lea.sflag [#allocation4], 1
    %1090 = vsyncpa %s1089, 1
    %1091 = vsyncpa [#allocation9], 1
    %s1092 = scalar_lea.sflag [#allocation9], 1
    %1093 = vsyncpa %s1092, 1

</llo_original>
